<compile_context>
chip_gen: v7x
topology: tpu7x:2x2x1
jax: 0.10.0
libtpu: 0.0.40
codegen_flags: <defaults>
</compile_context>

<pallas_src>
import functools

import jax
import jax.numpy as jnp
from jax import lax
from jax.experimental import pallas as pl
from jax.experimental.pallas import tpu as pltpu

LN_EPS = 1e-5            # torch.nn.LayerNorm default
DEFAULT_TILE_B = 1024    # multiple of 256 (fills the 256-wide MXU), 8-aligned


def _round_up(x: int, m: int) -> int:
    return ((x + m - 1) // m) * m


def _cdiv(a: int, b: int) -> int:
    return -(-a // b)


def _cls_decoder_kernel(
    x_ref,
    w1_ref, b1_ref, g1_ref, be1_ref,
    w2_ref, b2_ref, g2_ref, be2_ref,
    wo_ref, bo_ref,
    out_ref,
):
    # MXU wants native-dtype (e.g. bf16) operands with f32 accumulation.
    compute_dtype = w1_ref.dtype

    def linear_relu_ln(h, w_ref, b_ref, g_ref, be_ref):
        # Linear (MXU): native-dtype operands, f32 accumulator.
        y = jnp.dot(h, w_ref[...], preferred_element_type=jnp.float32)
        y = y + b_ref[...].astype(jnp.float32)
        # ReLU (VPU)
        y = jnp.maximum(y, 0.0)
        # Single-pass LayerNorm statistics in f32: var = E[y^2] - mean^2.
        mean = jnp.mean(y, axis=-1, keepdims=True)
        mean_sq = jnp.mean(y * y, axis=-1, keepdims=True)
        var = mean_sq - mean * mean
        y = (y - mean) * lax.rsqrt(var + LN_EPS)
        y = y * g_ref[...].astype(jnp.float32) + be_ref[...].astype(jnp.float32)
        # Cast back so the next matmul runs on the fast (e.g. bf16) MXU path.
        return y.astype(compute_dtype)

    # Cast the activation tile to the weight dtype BEFORE the first matmul so
    # layer 1 also uses the bf16 MXU fast path (cast is per-tile, VPU, hidden).
    h = x_ref[...].astype(compute_dtype)
    h = linear_relu_ln(h, w1_ref, b1_ref, g1_ref, be1_ref)
    h = linear_relu_ln(h, w2_ref, b2_ref, g2_ref, be2_ref)

    # Output head: Linear(d_model, n_cls_padded). Padded columns are zero.
    out = jnp.dot(h, wo_ref[...], preferred_element_type=jnp.float32)
    out = out + bo_ref[...].astype(jnp.float32)
    out_ref[...] = out.astype(out_ref.dtype)


def _vmem_limit_bytes(tile_b, d_model, n_cls_p, x_itemsize, p_itemsize,
                      single_buffer_params):
    params_bytes = (2 * d_model * d_model + d_model * n_cls_p
                    + 4 * d_model + n_cls_p) * p_itemsize
    params_mult = 1 if single_buffer_params else 2     # double-buffered by default
    # Double-buffered activation tiles + f32 intermediates the compiler
    # materializes inside the body (~3 copies of (tb, d) f32 + head output).
    act_bytes = (2 * tile_b * d_model * x_itemsize
                 + 2 * tile_b * n_cls_p * x_itemsize
                 + 3 * tile_b * d_model * 4
                 + tile_b * n_cls_p * 4)
    need = params_mult * params_bytes + act_bytes + (4 << 20)   # + headroom
    # Generation-aware cap with ~15% headroom for compiler scratch/spill.
    try:
        cap = int(pltpu.get_tpu_info().vmem_capacity_bytes * 0.85)
    except Exception:
        cap = 56 * 1024 * 1024   # conservative: fits v7x's 64 MiB physical VMEM
    return int(min(cap, max(need, 16 * 1024 * 1024)))


@functools.partial(jax.jit, static_argnames=("tile_b", "single_buffer_params"))
def cls_decoder_forward(x, params, *, tile_b: int = DEFAULT_TILE_B,
                        single_buffer_params: bool = False):
    """x: [batch, d_model] -> logits: [batch, n_cls]."""
    batch, d_model = x.shape
    n_cls = params["wo"].shape[1]

    # ---- lane-dense output: pad class dim up to a multiple of 128 ----------
    n_cls_p = max(128, _round_up(n_cls, 128))
    wo = params["wo"]
    bo = params["bo"]
    if n_cls_p != n_cls:
        wo = jnp.pad(wo, ((0, 0), (0, n_cls_p - n_cls)))
        bo = jnp.pad(bo, ((0, 0), (0, n_cls_p - n_cls)))

    # ---- batch tiling: 8-aligned tile, NO host-side pad of x ---------------
    # Ragged last tile is handled by Pallas boundary masking; rows are
    # independent (row-wise matmul-M and LayerNorm), so out-of-range rows in
    # the padded block only affect output rows that are never written back.
    tb = min(tile_b, _round_up(batch, 8))
    n_steps = _cdiv(batch, tb)
    # v7x has 2 TensorCores; with dimension_semantics=("parallel",) an odd
    # multi-step grid leaves them imbalanced. Prefer an even step count when it
    # keeps the tile MXU-friendly (>= 256 rows, 256-aligned).
    if batch >= 512 and n_steps % 2 == 1:
        tb_even = _round_up(_cdiv(batch, n_steps + 1), 256)
        if 256 <= tb_even <= tb and _cdiv(batch, tb_even) % 2 == 0:
            tb = tb_even
    grid = (_cdiv(batch, tb),)

    const2 = lambda i: (0, 0)          # params: resident across grid steps
    tile_map = lambda i: (i, 0)        # activations: new tile per step

    if single_buffer_params:
        # Constant blocks never re-fetch after step 0; a second buffer is pure
        # VMEM waste (matters most under v7x's 64 MiB).
        def const_spec(shape):
            return pl.BlockSpec(shape, const2, pipeline_mode=pl.Buffered(1))
    else:
        def const_spec(shape):
            return pl.BlockSpec(shape, const2)

    x_spec = pl.BlockSpec((tb, d_model), tile_map)
    w_dd_spec = const_spec((d_model, d_model))
    vec_d_spec = const_spec((1, d_model))
    wo_spec = const_spec((d_model, n_cls_p))
    bo_spec = const_spec((1, n_cls_p))
    out_spec = pl.BlockSpec((tb, n_cls_p), tile_map)

    x_itemsize = jnp.dtype(x.dtype).itemsize
    p_itemsize = jnp.dtype(params["w1"].dtype).itemsize
    cost = pl.CostEstimate(
        flops=2 * batch * d_model * (2 * d_model + n_cls_p),
        transcendentals=2 * batch,   # rsqrt per row per LayerNorm
        bytes_accessed=(batch * (d_model + n_cls_p)) * x_itemsize
        + (2 * d_model * d_model + d_model * n_cls_p
           + 4 * d_model + n_cls_p) * p_itemsize,
    )

    out_padded = pl.pallas_call(
        _cls_decoder_kernel,
        out_shape=jax.ShapeDtypeStruct((batch, n_cls_p), x.dtype),
        grid=grid,
        in_specs=[
            x_spec,
            w_dd_spec, vec_d_spec, vec_d_spec, vec_d_spec,   # layer 1
            w_dd_spec, vec_d_spec, vec_d_spec, vec_d_spec,   # layer 2
            wo_spec, bo_spec,                                # head
        ],
        out_specs=out_spec,
        compiler_params=pltpu.CompilerParams(
            dimension_semantics=("parallel",),
            vmem_limit_bytes=_vmem_limit_bytes(
                tb, d_model, n_cls_p, x_itemsize, p_itemsize,
                single_buffer_params),
        ),
        cost_estimate=cost,
    )(
        x,
        params["w1"], params["b1"], params["g1"], params["be1"],
        params["w2"], params["b2"], params["g2"], params["be2"],
        wo, bo,
    )
    return out_padded[:, :n_cls]


def init_params(key, d_model, n_cls, dtype=jnp.float32):
    """Deterministic synthetic parameters matching ClsDecoder(d_model, n_cls, nlayers=3).

    For production speed store these in bf16 (the kernel keeps f32 accumulation);
    the MXU bf16 path is ~4-8x faster than f32 on every TPU generation.
    """
    ks = jax.random.split(key, 6)
    scale = 1.0 / jnp.sqrt(d_model)

    def lin_w(k, fan_in, fan_out):
        # stored as (in, out) so the kernel does x @ W
        return (jax.random.normal(k, (fan_in, fan_out), jnp.float32) * scale).astype(dtype)

    return {
        "w1": lin_w(ks[0], d_model, d_model),
        "b1": (jax.random.normal(ks[1], (1, d_model)) * 0.01).astype(dtype),
        "g1": jnp.ones((1, d_model), dtype),
        "be1": jnp.zeros((1, d_model), dtype),
        "w2": lin_w(ks[2], d_model, d_model),
        "b2": (jax.random.normal(ks[3], (1, d_model)) * 0.01).astype(dtype),
        "g2": jnp.ones((1, d_model), dtype),
        "be2": jnp.zeros((1, d_model), dtype),
        "wo": lin_w(ks[4], d_model, n_cls),
        "bo": (jax.random.normal(ks[5], (1, n_cls)) * 0.01).astype(dtype),
    }


def cls_decoder_ref(x, p):
    """Pure-JAX reference mirroring the PyTorch forward."""
    def block(h, w, b, g, be):
        h = jnp.maximum(h @ w + b, 0.0)
        mean = jnp.mean(h, axis=-1, keepdims=True)
        var = jnp.mean((h - mean) ** 2, axis=-1, keepdims=True)
        h = (h - mean) / jnp.sqrt(var + LN_EPS)
        return h * g + be

    h = block(x.astype(jnp.float32), p["w1"].astype(jnp.float32),
              p["b1"].astype(jnp.float32), p["g1"].astype(jnp.float32),
              p["be1"].astype(jnp.float32))
    h = block(h, p["w2"].astype(jnp.float32), p["b2"].astype(jnp.float32),
              p["g2"].astype(jnp.float32), p["be2"].astype(jnp.float32))
    return h @ p["wo"].astype(jnp.float32) + p["bo"].astype(jnp.float32)


if __name__ == "__main__":
    d_model, n_cls = 64, 4
    key = jax.random.PRNGKey(0)
    kx, kp = jax.random.split(key)
    params = init_params(kp, d_model, n_cls, dtype=jnp.float32)

    # 1) f32, exact-tile batch.
    x8 = jax.random.normal(kx, (8, d_model), jnp.float32)
    out8 = jax.block_until_ready(cls_decoder_forward(x8, params))
    ref8 = cls_decoder_ref(x8, params)
    assert out8.shape == (8, n_cls), out8.shape
    assert jnp.allclose(out8, ref8, atol=1e-4, rtol=1e-4), float(jnp.abs(out8 - ref8).max())

    # 2) f32, ragged batch (not a tile multiple): exercises the no-host-pad path.
    x10 = jax.random.normal(kx, (10, d_model), jnp.float32)
    out10 = jax.block_until_ready(cls_decoder_forward(x10, params))
    ref10 = cls_decoder_ref(x10, params)
    assert out10.shape == (10, n_cls), out10.shape
    assert jnp.allclose(out10, ref10, atol=1e-4, rtol=1e-4), float(jnp.abs(out10 - ref10).max())

    # 3) bf16 fast path (the recommended production configuration).
    params_bf16 = jax.tree_util.tree_map(lambda a: a.astype(jnp.bfloat16), params)
    out_bf16 = jax.block_until_ready(
        cls_decoder_forward(x8.astype(jnp.bfloat16), params_bf16))
    assert out_bf16.shape == (8, n_cls), out_bf16.shape
    assert jnp.allclose(out_bf16.astype(jnp.float32), ref8, atol=1.5e-1, rtol=1.5e-1), \
        float(jnp.abs(out_bf16.astype(jnp.float32) - ref8).max())

    # 4) Opportunistic: single-buffered resident params (v7x VMEM reclaim).
    #    Never affects the pass/fail status of this script.
    try:
        out_sb = jax.block_until_ready(
            cls_decoder_forward(x8, params, single_buffer_params=True))
        assert jnp.allclose(out_sb, ref8, atol=1e-4, rtol=1e-4)
    except Exception:
        pass  # installed Pallas rejects Buffered(1); double-buffered path already verified

    print("KERNEL_OK")
</pallas_src>

<mosaic_0001>
module attributes {stable_mosaic.version = 11 : i64} {
  func.func @_cls_decoder_kernel(%arg0: i32, %arg1: memref<8x64xf32, #tpu.memory_space<vmem>>, %arg2: memref<64x64xf32, #tpu.memory_space<vmem>>, %arg3: memref<1x64xf32, #tpu.memory_space<vmem>>, %arg4: memref<1x64xf32, #tpu.memory_space<vmem>>, %arg5: memref<1x64xf32, #tpu.memory_space<vmem>>, %arg6: memref<64x64xf32, #tpu.memory_space<vmem>>, %arg7: memref<1x64xf32, #tpu.memory_space<vmem>>, %arg8: memref<1x64xf32, #tpu.memory_space<vmem>>, %arg9: memref<1x64xf32, #tpu.memory_space<vmem>>, %arg10: memref<64x128xf32, #tpu.memory_space<vmem>>, %arg11: memref<1x128xf32, #tpu.memory_space<vmem>>, %arg12: memref<8x128xf32, #tpu.memory_space<vmem>>) attributes {dimension_semantics = [#tpu.dimension_semantics<parallel>], iteration_bounds = array<i64: 1>, scalar_prefetch = 0 : i64, scratch_operands = 0 : i64, tpu.core_type = #tpu.core_type<tc>, window_params = [{transform_indices = @transform_0, window_bounds = array<i64: 8, 64>}, {pipeline_mode = #tpu.pipeline_mode<synchronous>, transform_indices = @transform_1, window_bounds = array<i64: 64, 64>}, {pipeline_mode = #tpu.pipeline_mode<synchronous>, transform_indices = @transform_2, window_bounds = array<i64: 1, 64>}, {pipeline_mode = #tpu.pipeline_mode<synchronous>, transform_indices = @transform_3, window_bounds = array<i64: 1, 64>}, {pipeline_mode = #tpu.pipeline_mode<synchronous>, transform_indices = @transform_4, window_bounds = array<i64: 1, 64>}, {pipeline_mode = #tpu.pipeline_mode<synchronous>, transform_indices = @transform_5, window_bounds = array<i64: 64, 64>}, {pipeline_mode = #tpu.pipeline_mode<synchronous>, transform_indices = @transform_6, window_bounds = array<i64: 1, 64>}, {pipeline_mode = #tpu.pipeline_mode<synchronous>, transform_indices = @transform_7, window_bounds = array<i64: 1, 64>}, {pipeline_mode = #tpu.pipeline_mode<synchronous>, transform_indices = @transform_8, window_bounds = array<i64: 1, 64>}, {pipeline_mode = #tpu.pipeline_mode<synchronous>, transform_indices = @transform_9, window_bounds = array<i64: 64, 128>}, {pipeline_mode = #tpu.pipeline_mode<synchronous>, transform_indices = @transform_10, window_bounds = array<i64: 1, 128>}, {transform_indices = @transform_11, window_bounds = array<i64: 8, 128>}]} {
    %c0 = arith.constant 0 : index
    %c0_0 = arith.constant 0 : index
    %0 = vector.load %arg1[%c0, %c0_0] : memref<8x64xf32, #tpu.memory_space<vmem>>, vector<8x64xf32>
    %c0_1 = arith.constant 0 : index
    %c0_2 = arith.constant 0 : index
    %1 = vector.load %arg2[%c0_1, %c0_2] : memref<64x64xf32, #tpu.memory_space<vmem>>, vector<64x64xf32>
    %cst = arith.constant dense<0.000000e+00> : vector<8x64xf32>
    %2 = tpu.matmul %0, %1, %cst {dimension_numbers = #tpu.dot_dimension_numbers<[1], [0], [0], [1], [0, 0, 1, 1], [], []>} : vector<8x64xf32>, vector<64x64xf32>, vector<8x64xf32> -> vector<8x64xf32>
    %c0_3 = arith.constant 0 : index
    %c0_4 = arith.constant 0 : index
    %3 = vector.load %arg3[%c0_3, %c0_4] : memref<1x64xf32, #tpu.memory_space<vmem>>, vector<1x64xf32>
    %4 = vector.broadcast %3 : vector<1x64xf32> to vector<8x64xf32>
    %5 = arith.addf %2, %4 : vector<8x64xf32>
    %cst_5 = arith.constant 0.000000e+00 : f32
    %6 = vector.broadcast %cst_5 : f32 to vector<8x64xf32>
    %7 = arith.maximumf %5, %6 : vector<8x64xf32>
    %cst_6 = arith.constant dense<0.000000e+00> : vector<8xf32>
    %8 = vector.multi_reduction <add>, %7, %cst_6 [1] : vector<8x64xf32> to vector<8xf32>
    %9 = vector.shape_cast %8 : vector<8xf32> to vector<8x1xf32>
    %cst_7 = arith.constant 6.400000e+01 : f32
    %10 = vector.broadcast %cst_7 : f32 to vector<8x1xf32>
    %11 = arith.divf %9, %10 : vector<8x1xf32>
    %12 = arith.mulf %7, %7 : vector<8x64xf32>
    %cst_8 = arith.constant dense<0.000000e+00> : vector<8xf32>
    %13 = vector.multi_reduction <add>, %12, %cst_8 [1] : vector<8x64xf32> to vector<8xf32>
    %14 = vector.shape_cast %13 : vector<8xf32> to vector<8x1xf32>
    %cst_9 = arith.constant 6.400000e+01 : f32
    %15 = vector.broadcast %cst_9 : f32 to vector<8x1xf32>
    %16 = arith.divf %14, %15 : vector<8x1xf32>
    %17 = arith.mulf %11, %11 : vector<8x1xf32>
    %18 = arith.subf %16, %17 : vector<8x1xf32>
    %19 = vector.broadcast %11 : vector<8x1xf32> to vector<8x64xf32>
    %20 = arith.subf %7, %19 : vector<8x64xf32>
    %cst_10 = arith.constant 9.99999974E-6 : f32
    %21 = vector.broadcast %cst_10 : f32 to vector<8x1xf32>
    %22 = arith.addf %18, %21 : vector<8x1xf32>
    %23 = math.rsqrt %22 : vector<8x1xf32>
    %24 = vector.broadcast %23 : vector<8x1xf32> to vector<8x64xf32>
    %25 = arith.mulf %20, %24 : vector<8x64xf32>
    %c0_11 = arith.constant 0 : index
    %c0_12 = arith.constant 0 : index
    %26 = vector.load %arg4[%c0_11, %c0_12] : memref<1x64xf32, #tpu.memory_space<vmem>>, vector<1x64xf32>
    %27 = vector.broadcast %26 : vector<1x64xf32> to vector<8x64xf32>
    %28 = arith.mulf %25, %27 : vector<8x64xf32>
    %c0_13 = arith.constant 0 : index
    %c0_14 = arith.constant 0 : index
    %29 = vector.load %arg5[%c0_13, %c0_14] : memref<1x64xf32, #tpu.memory_space<vmem>>, vector<1x64xf32>
    %30 = vector.broadcast %29 : vector<1x64xf32> to vector<8x64xf32>
    %31 = arith.addf %28, %30 : vector<8x64xf32>
    %c0_15 = arith.constant 0 : index
    %c0_16 = arith.constant 0 : index
    %32 = vector.load %arg6[%c0_15, %c0_16] : memref<64x64xf32, #tpu.memory_space<vmem>>, vector<64x64xf32>
    %cst_17 = arith.constant dense<0.000000e+00> : vector<8x64xf32>
    %33 = tpu.matmul %31, %32, %cst_17 {dimension_numbers = #tpu.dot_dimension_numbers<[1], [0], [0], [1], [0, 0, 1, 1], [], []>} : vector<8x64xf32>, vector<64x64xf32>, vector<8x64xf32> -> vector<8x64xf32>
    %c0_18 = arith.constant 0 : index
    %c0_19 = arith.constant 0 : index
    %34 = vector.load %arg7[%c0_18, %c0_19] : memref<1x64xf32, #tpu.memory_space<vmem>>, vector<1x64xf32>
    %35 = vector.broadcast %34 : vector<1x64xf32> to vector<8x64xf32>
    %36 = arith.addf %33, %35 : vector<8x64xf32>
    %cst_20 = arith.constant 0.000000e+00 : f32
    %37 = vector.broadcast %cst_20 : f32 to vector<8x64xf32>
    %38 = arith.maximumf %36, %37 : vector<8x64xf32>
    %cst_21 = arith.constant dense<0.000000e+00> : vector<8xf32>
    %39 = vector.multi_reduction <add>, %38, %cst_21 [1] : vector<8x64xf32> to vector<8xf32>
    %40 = vector.shape_cast %39 : vector<8xf32> to vector<8x1xf32>
    %cst_22 = arith.constant 6.400000e+01 : f32
    %41 = vector.broadcast %cst_22 : f32 to vector<8x1xf32>
    %42 = arith.divf %40, %41 : vector<8x1xf32>
    %43 = arith.mulf %38, %38 : vector<8x64xf32>
    %cst_23 = arith.constant dense<0.000000e+00> : vector<8xf32>
    %44 = vector.multi_reduction <add>, %43, %cst_23 [1] : vector<8x64xf32> to vector<8xf32>
    %45 = vector.shape_cast %44 : vector<8xf32> to vector<8x1xf32>
    %cst_24 = arith.constant 6.400000e+01 : f32
    %46 = vector.broadcast %cst_24 : f32 to vector<8x1xf32>
    %47 = arith.divf %45, %46 : vector<8x1xf32>
    %48 = arith.mulf %42, %42 : vector<8x1xf32>
    %49 = arith.subf %47, %48 : vector<8x1xf32>
    %50 = vector.broadcast %42 : vector<8x1xf32> to vector<8x64xf32>
    %51 = arith.subf %38, %50 : vector<8x64xf32>
    %cst_25 = arith.constant 9.99999974E-6 : f32
    %52 = vector.broadcast %cst_25 : f32 to vector<8x1xf32>
    %53 = arith.addf %49, %52 : vector<8x1xf32>
    %54 = math.rsqrt %53 : vector<8x1xf32>
    %55 = vector.broadcast %54 : vector<8x1xf32> to vector<8x64xf32>
    %56 = arith.mulf %51, %55 : vector<8x64xf32>
    %c0_26 = arith.constant 0 : index
    %c0_27 = arith.constant 0 : index
    %57 = vector.load %arg8[%c0_26, %c0_27] : memref<1x64xf32, #tpu.memory_space<vmem>>, vector<1x64xf32>
    %58 = vector.broadcast %57 : vector<1x64xf32> to vector<8x64xf32>
    %59 = arith.mulf %56, %58 : vector<8x64xf32>
    %c0_28 = arith.constant 0 : index
    %c0_29 = arith.constant 0 : index
    %60 = vector.load %arg9[%c0_28, %c0_29] : memref<1x64xf32, #tpu.memory_space<vmem>>, vector<1x64xf32>
    %61 = vector.broadcast %60 : vector<1x64xf32> to vector<8x64xf32>
    %62 = arith.addf %59, %61 : vector<8x64xf32>
    %c0_30 = arith.constant 0 : index
    %c0_31 = arith.constant 0 : index
    %63 = vector.load %arg10[%c0_30, %c0_31] : memref<64x128xf32, #tpu.memory_space<vmem>>, vector<64x128xf32>
    %cst_32 = arith.constant dense<0.000000e+00> : vector<8x128xf32>
    %64 = tpu.matmul %62, %63, %cst_32 {dimension_numbers = #tpu.dot_dimension_numbers<[1], [0], [0], [1], [0, 0, 1, 1], [], []>} : vector<8x64xf32>, vector<64x128xf32>, vector<8x128xf32> -> vector<8x128xf32>
    %c0_33 = arith.constant 0 : index
    %c0_34 = arith.constant 0 : index
    %65 = vector.load %arg11[%c0_33, %c0_34] : memref<1x128xf32, #tpu.memory_space<vmem>>, vector<1x128xf32>
    %66 = vector.broadcast %65 : vector<1x128xf32> to vector<8x128xf32>
    %67 = arith.addf %64, %66 : vector<8x128xf32>
    %c0_35 = arith.constant 0 : index
    %c0_36 = arith.constant 0 : index
    %68 = vector.load %arg12[%c0_35, %c0_36] : memref<8x128xf32, #tpu.memory_space<vmem>>, vector<8x128xf32>
    tpu.vector_store %arg12[%c0_35, %c0_36], %67 {strides = array<i32>} : memref<8x128xf32, #tpu.memory_space<vmem>>, vector<8x128xf32>,
    return
  }
  func.func @transform_0(%arg0: i32) -> (i32, i32) {
    %c0_i32 = arith.constant 0 : i32
    %c0_i32_0 = arith.constant 0 : i32
    return %arg0, %c0_i32 : i32, i32
  }
  func.func @transform_1(%arg0: i32) -> (i32, i32) {
    %c0_i32 = arith.constant 0 : i32
    %c0_i32_0 = arith.constant 0 : i32
    %c0_i32_1 = arith.constant 0 : i32
    return %c0_i32, %c0_i32_0 : i32, i32
  }
  func.func @transform_2(%arg0: i32) -> (i32, i32) {
    %c0_i32 = arith.constant 0 : i32
    %c0_i32_0 = arith.constant 0 : i32
    %c0_i32_1 = arith.constant 0 : i32
    return %c0_i32, %c0_i32_0 : i32, i32
  }
  func.func @transform_3(%arg0: i32) -> (i32, i32) {
    %c0_i32 = arith.constant 0 : i32
    %c0_i32_0 = arith.constant 0 : i32
    %c0_i32_1 = arith.constant 0 : i32
    return %c0_i32, %c0_i32_0 : i32, i32
  }
  func.func @transform_4(%arg0: i32) -> (i32, i32) {
    %c0_i32 = arith.constant 0 : i32
    %c0_i32_0 = arith.constant 0 : i32
    %c0_i32_1 = arith.constant 0 : i32
    return %c0_i32, %c0_i32_0 : i32, i32
  }
  func.func @transform_5(%arg0: i32) -> (i32, i32) {
    %c0_i32 = arith.constant 0 : i32
    %c0_i32_0 = arith.constant 0 : i32
    %c0_i32_1 = arith.constant 0 : i32
    return %c0_i32, %c0_i32_0 : i32, i32
  }
  func.func @transform_6(%arg0: i32) -> (i32, i32) {
    %c0_i32 = arith.constant 0 : i32
    %c0_i32_0 = arith.constant 0 : i32
    %c0_i32_1 = arith.constant 0 : i32
    return %c0_i32, %c0_i32_0 : i32, i32
  }
  func.func @transform_7(%arg0: i32) -> (i32, i32) {
    %c0_i32 = arith.constant 0 : i32
    %c0_i32_0 = arith.constant 0 : i32
    %c0_i32_1 = arith.constant 0 : i32
    return %c0_i32, %c0_i32_0 : i32, i32
  }
  func.func @transform_8(%arg0: i32) -> (i32, i32) {
    %c0_i32 = arith.constant 0 : i32
    %c0_i32_0 = arith.constant 0 : i32
    %c0_i32_1 = arith.constant 0 : i32
    return %c0_i32, %c0_i32_0 : i32, i32
  }
  func.func @transform_9(%arg0: i32) -> (i32, i32) {
    %c0_i32 = arith.constant 0 : i32
    %c0_i32_0 = arith.constant 0 : i32
    %c0_i32_1 = arith.constant 0 : i32
    return %c0_i32, %c0_i32_0 : i32, i32
  }
  func.func @transform_10(%arg0: i32) -> (i32, i32) {
    %c0_i32 = arith.constant 0 : i32
    %c0_i32_0 = arith.constant 0 : i32
    %c0_i32_1 = arith.constant 0 : i32
    return %c0_i32, %c0_i32_0 : i32, i32
  }
  func.func @transform_11(%arg0: i32) -> (i32, i32) {
    %c0_i32 = arith.constant 0 : i32
    %c0_i32_0 = arith.constant 0 : i32
    return %arg0, %c0_i32 : i32, i32
  }
}

</mosaic_0001>

<llo_original>
// kernel: cls_decoder_forward.1
$region0: #{cls_decoder_forward.1}
  #allocation0 [shape = 'u32[]', space=smem, size = 0x4, offset = 0x4, fixed_abs, tag = 'smem constant byte address 0x4 - core index']
  #allocation1 [shape = 'u32[144,128]{1,0:T(1,128)}', space=vmem, size = 0x12000, scoped, tag = 'internal scratch']
  %s0 = inlined_call_operand.vmem [shape: f32[8,64], index: 0, kind: input, shape index: {}]
  %s1 = inlined_call_operand.vmem [shape: f32[64,64], index: 1, kind: input, shape index: {}]
  %s2 = inlined_call_operand.vmem [shape: f32[1,64], index: 2, kind: input, shape index: {}]
  %s3 = inlined_call_operand.vmem [shape: f32[1,64], index: 3, kind: input, shape index: {}]
  %s4 = inlined_call_operand.vmem [shape: f32[1,64], index: 4, kind: input, shape index: {}]
  %s5 = inlined_call_operand.vmem [shape: f32[64,64], index: 5, kind: input, shape index: {}]
  %s6 = inlined_call_operand.vmem [shape: f32[1,64], index: 6, kind: input, shape index: {}]
  %s7 = inlined_call_operand.vmem [shape: f32[1,64], index: 7, kind: input, shape index: {}]
  %s8 = inlined_call_operand.vmem [shape: f32[1,64], index: 8, kind: input, shape index: {}]
  %s9 = inlined_call_operand.vmem [shape: f32[64,128], index: 9, kind: input, shape index: {}]
  %s10 = inlined_call_operand.vmem [shape: f32[1,128], index: 10, kind: input, shape index: {}]
  %s11 = inlined_call_operand.vmem [shape: f32[8,128], index: 11, kind: output, shape index: {}]
  %s12 = sld [smem:[#allocation0]]
  $region54: #{cls_decoder_forward.1} parent=0
    _
  %s14 = ssub.s32 1, %s12
  %s15 = scalar_select 0, %s14, %s12
  // Predicated region
  $region2: #{cls_decoder_forward.1} parent=0 // pred_check
    _
  $region3: #{cls_decoder_forward.1} parent=0 // pred_check_branch
    %17 = sbr.rel (0) target = $region5
  $region4: #{cls_decoder_forward.1} parent=0 // pred_region
    _
  $region5: #{cls_decoder_forward.1} parent=0 // pred_fallthru
    _
  // Predicated region
  $region6: #{cls_decoder_forward.1} parent=0 // pred_check
    _
  $region7: #{cls_decoder_forward.1} parent=0 // pred_check_branch
    %19 = sbr.rel (0) target = $region9
  $region8: #{cls_decoder_forward.1} parent=0 // pred_region
    _
  $region9: #{cls_decoder_forward.1} parent=0 // pred_fallthru
    _
  // Predicated region
  $region10: #{cls_decoder_forward.1} parent=0 // pred_check
    _
  $region11: #{cls_decoder_forward.1} parent=0 // pred_check_branch
    %21 = sbr.rel (0) target = $region13
  $region12: #{cls_decoder_forward.1} parent=0 // pred_region
    _
  $region13: #{cls_decoder_forward.1} parent=0 // pred_fallthru
    _
  // Predicated region
  $region14: #{cls_decoder_forward.1} parent=0 // pred_check
    _
  $region15: #{cls_decoder_forward.1} parent=0 // pred_check_branch
    %23 = sbr.rel (0) target = $region17
  $region16: #{cls_decoder_forward.1} parent=0 // pred_region
    _
  $region17: #{cls_decoder_forward.1} parent=0 // pred_fallthru
    _
  // Predicated region
  $region18: #{cls_decoder_forward.1} parent=0 // pred_check
    _
  $region19: #{cls_decoder_forward.1} parent=0 // pred_check_branch
    %25 = sbr.rel (0) target = $region21
  $region20: #{cls_decoder_forward.1} parent=0 // pred_region
    _
  $region21: #{cls_decoder_forward.1} parent=0 // pred_fallthru
    _
  // Predicated region
  $region22: #{cls_decoder_forward.1} parent=0 // pred_check
    _
  $region23: #{cls_decoder_forward.1} parent=0 // pred_check_branch
    %27 = sbr.rel (0) target = $region25
  $region24: #{cls_decoder_forward.1} parent=0 // pred_region
    _
  $region25: #{cls_decoder_forward.1} parent=0 // pred_fallthru
    _
  // Predicated region
  $region26: #{cls_decoder_forward.1} parent=0 // pred_check
    _
  $region27: #{cls_decoder_forward.1} parent=0 // pred_check_branch
    %29 = sbr.rel (0) target = $region29
  $region28: #{cls_decoder_forward.1} parent=0 // pred_region
    _
  $region29: #{cls_decoder_forward.1} parent=0 // pred_fallthru
    _
  // Predicated region
  $region30: #{cls_decoder_forward.1} parent=0 // pred_check
    _
  $region31: #{cls_decoder_forward.1} parent=0 // pred_check_branch
    %31 = sbr.rel (0) target = $region33
  $region32: #{cls_decoder_forward.1} parent=0 // pred_region
    _
  $region33: #{cls_decoder_forward.1} parent=0 // pred_fallthru
    _
  // Predicated region
  $region34: #{cls_decoder_forward.1} parent=0 // pred_check
    _
  $region35: #{cls_decoder_forward.1} parent=0 // pred_check_branch
    %33 = sbr.rel (0) target = $region37
  $region36: #{cls_decoder_forward.1} parent=0 // pred_region
    _
  $region37: #{cls_decoder_forward.1} parent=0 // pred_fallthru
    _
  // Predicated region
  $region38: #{cls_decoder_forward.1} parent=0 // pred_check
    _
  $region39: #{cls_decoder_forward.1} parent=0 // pred_check_branch
    %35 = sbr.rel (0) target = $region41
  $region40: #{cls_decoder_forward.1} parent=0 // pred_region
    _
  $region41: #{cls_decoder_forward.1} parent=0 // pred_fallthru
    _
  // Predicated region
  $region42: #{cls_decoder_forward.1} parent=0 // pred_check
    _
  $region43: #{cls_decoder_forward.1} parent=0 // pred_check_branch
    %37 = sbr.rel (0) target = $region45
  $region44: #{cls_decoder_forward.1} parent=0 // pred_region
    _
  $region45: #{cls_decoder_forward.1} parent=0 // pred_fallthru
    _
  %v38 = vld [vmem:[%s0] sm:$0xff]
  %v39 = vld [vmem:[%s1] sm:$0xff]
  %v40 = vld [vmem:[%s1 + $0x8] sm:$0xff]
  %v41 = vld [vmem:[%s1 + $0x10] sm:$0xff]
  %v42 = vld [vmem:[%s1 + $0x18] sm:$0xff]
  %v43 = vld [vmem:[%s1 + $0x20] sm:$0xff]
  %v44 = vld [vmem:[%s1 + $0x28] sm:$0xff]
  %v45 = vld [vmem:[%s1 + $0x30] sm:$0xff]
  %v46 = vld [vmem:[%s1 + $0x38] sm:$0xff]
  %v47 = vld [vmem:[%s2] sm:$0x1]
  %v49 = vlaneseq
  %v50 = vshrl.u32 %v49, 7
  %v51 = vsub.s32 0, %v50
  %v52 = vrot.slane %v47, %v51
  %vm54 = vcmask 523264
  %v56 = vsel %vm54, %v38, 0
  %58 = vmatprep.subr.mxu0 0.0
  %59 = vmatpush1.msra.mxu0 %v39
  %60 = vmatprep.subr.mxu0 0.0
  %61 = vmatpush1.msra.mxu0 %v40
  %62 = vmatprep.subr.mxu0 0.0
  %63 = vmatpush1.msra.mxu0 %v41
  %64 = vmatprep.subr.mxu0 0.0
  %65 = vmatpush1.msra.mxu0 %v42
  %66 = vmatprep.subr.mxu0 0.0
  %67 = vmatpush1.msra.mxu0 %v43
  %68 = vmatprep.subr.mxu0 0.0
  %69 = vmatpush1.msra.mxu0 %v44
  %70 = vmatprep.subr.mxu0 0.0
  %71 = vmatpush1.msra.mxu0 %v45
  %72 = vmatprep.subr.mxu0 0.0
  %73 = vmatpush1.msra.mxu0 %v46
  %74 = vmatprep.subr.mxu0 0.0
  %75 = vmatpush1.msra.mxu0 0.0
  %76 = vmatprep.subr.mxu0 0.0
  %77 = vmatpush1.msra.mxu0 0.0
  %78 = vmatprep.subr.mxu0 0.0
  %79 = vmatpush1.msra.mxu0 0.0
  %80 = vmatprep.subr.mxu0 0.0
  %81 = vmatpush1.msra.mxu0 0.0
  %82 = vmatprep.subr.mxu0 0.0
  %83 = vmatpush1.msra.mxu0 0.0
  %84 = vmatprep.subr.mxu0 0.0
  %85 = vmatpush1.msra.mxu0 0.0
  %86 = vmatprep.subr.mxu0 0.0
  %87 = vmatpush1.msra.mxu0 0.0
  %88 = vmatprep.subr.mxu0 0.0
  %89 = vmatpush1.msra.mxu0 0.0
  %90 = vmatprep.subr.mxu0 0.0
  %91 = vmatpush1.msra.mxu0 0.0
  %92 = vmatprep.subr.mxu0 0.0
  %93 = vmatpush1.msra.mxu0 0.0
  %94 = vmatprep.subr.mxu0 0.0
  %95 = vmatpush1.msra.mxu0 0.0
  %96 = vmatprep.subr.mxu0 0.0
  %97 = vmatpush1.msra.mxu0 0.0
  %98 = vmatprep.subr.mxu0 0.0
  %99 = vmatpush1.msra.mxu0 0.0
  %100 = vmatprep.subr.mxu0 0.0
  %101 = vmatpush1.msra.mxu0 0.0
  %102 = vmatprep.subr.mxu0 0.0
  %103 = vmatpush1.msra.mxu0 0.0
  %104 = vmatprep.subr.mxu0 0.0
  %105 = vmatpush1.msra.mxu0 0.0
  %106 = vmatprep.subr.mxu0 0.0
  %107 = vmatpush1.msra.mxu0 0.0
  %108 = vmatprep.subr.mxu0 0.0
  %109 = vmatpush1.msra.mxu0 0.0
  %110 = vmatprep.subr.mxu0 0.0
  %111 = vmatpush1.msra.mxu0 0.0
  %112 = vmatprep.subr.mxu0 0.0
  %113 = vmatpush1.msra.mxu0 0.0
  %114 = vmatprep.subr.mxu0 0.0
  %115 = vmatpush1.msra.mxu0 0.0
  %116 = vmatprep.subr.mxu0 0.0
  %117 = vmatpush1.msra.mxu0 0.0
  %118 = vmatprep.subr.mxu0 0.0
  %119 = vmatpush1.msra.mxu0 0.0
  %120 = vmatprep.subr.mxu0 0.0
  %121 = vmatpush1.msra.mxu0 0.0
  %122 = vmatprep.mubr.f32.mxu0 0.0
  %123 = vmatmul.mubr.f32.gmra.mrb[0].mxu0 %v56
  %v124 = vpop.f32.mrb[0].mxu0
  %v125 = vadd.f32 %v52, %v124
  %v126 = vpop.f32.mrb[0].mxu0
  %127 = vdwg.mxu0
  %v128 = vmax.f32 %v125, 0.0
  %v129 = vsel %vm54, %v128, 0.0
  %130 = vadd.xlane.f32.xlu0 %v129
  %v131 = vpop.xlane.xlu0 %130
  %v132 = vrcp.pop 64.0
  %v133 = vmul.f32 %v131, %v132
  %v134 = vmul.f32 %v128, %v128
  %v135 = vsel %vm54, %v134, 0.0
  %136 = vadd.xlane.f32.xlu0 %v135
  %v137 = vpop.xlane.xlu0 %136
  %v138 = vmul.f32 %v137, %v132
  %v139 = vmul.f32 %v133, %v133
  %v140 = vsub.f32 %v138, %v139
  %v141 = vsub.f32 %v128, %v133
  %v142 = vadd.f32 %v140, 1e-05
  %v143 = vrsqrt.pop %v142
  %v144 = vmul.f32 %v141, %v143
  %v145 = vld [vmem:[%s3] sm:$0x1]
  %v147 = vlaneseq
  %v148 = vshrl.u32 %v147, 7
  %v149 = vsub.s32 0, %v148
  %v150 = vrot.slane %v145, %v149
  %v152 = vmul.f32 %v144, %v150
  %v153 = vld [vmem:[%s4] sm:$0x1]
  %v155 = vlaneseq
  %v156 = vshrl.u32 %v155, 7
  %v157 = vsub.s32 0, %v156
  %v158 = vrot.slane %v153, %v157
  %v160 = vadd.f32 %v152, %v158
  %v161 = vld [vmem:[%s5] sm:$0xff]
  %v162 = vld [vmem:[%s5 + $0x8] sm:$0xff]
  %v163 = vld [vmem:[%s5 + $0x10] sm:$0xff]
  %v164 = vld [vmem:[%s5 + $0x18] sm:$0xff]
  %v165 = vld [vmem:[%s5 + $0x20] sm:$0xff]
  %v166 = vld [vmem:[%s5 + $0x28] sm:$0xff]
  %v167 = vld [vmem:[%s5 + $0x30] sm:$0xff]
  %v168 = vld [vmem:[%s5 + $0x38] sm:$0xff]
  %v169 = vld [vmem:[%s6] sm:$0x1]
  %v171 = vlaneseq
  %v172 = vshrl.u32 %v171, 7
  %v173 = vsub.s32 0, %v172
  %v174 = vrot.slane %v169, %v173
  %v177 = vsel %vm54, %v160, 0
  %179 = vmatprep.subr.mxu0 0.0
  %180 = vmatpush1.msra.mxu0 %v161
  %181 = vmatprep.subr.mxu0 0.0
  %182 = vmatpush1.msra.mxu0 %v162
  %183 = vmatprep.subr.mxu0 0.0
  %184 = vmatpush1.msra.mxu0 %v163
  %185 = vmatprep.subr.mxu0 0.0
  %186 = vmatpush1.msra.mxu0 %v164
  %187 = vmatprep.subr.mxu0 0.0
  %188 = vmatpush1.msra.mxu0 %v165
  %189 = vmatprep.subr.mxu0 0.0
  %190 = vmatpush1.msra.mxu0 %v166
  %191 = vmatprep.subr.mxu0 0.0
  %192 = vmatpush1.msra.mxu0 %v167
  %193 = vmatprep.subr.mxu0 0.0
  %194 = vmatpush1.msra.mxu0 %v168
  %195 = vmatprep.subr.mxu0 0.0
  %196 = vmatpush1.msra.mxu0 0.0
  %197 = vmatprep.subr.mxu0 0.0
  %198 = vmatpush1.msra.mxu0 0.0
  %199 = vmatprep.subr.mxu0 0.0
  %200 = vmatpush1.msra.mxu0 0.0
  %201 = vmatprep.subr.mxu0 0.0
  %202 = vmatpush1.msra.mxu0 0.0
  %203 = vmatprep.subr.mxu0 0.0
  %204 = vmatpush1.msra.mxu0 0.0
  %205 = vmatprep.subr.mxu0 0.0
  %206 = vmatpush1.msra.mxu0 0.0
  %207 = vmatprep.subr.mxu0 0.0
  %208 = vmatpush1.msra.mxu0 0.0
  %209 = vmatprep.subr.mxu0 0.0
  %210 = vmatpush1.msra.mxu0 0.0
  %211 = vmatprep.subr.mxu0 0.0
  %212 = vmatpush1.msra.mxu0 0.0
  %213 = vmatprep.subr.mxu0 0.0
  %214 = vmatpush1.msra.mxu0 0.0
  %215 = vmatprep.subr.mxu0 0.0
  %216 = vmatpush1.msra.mxu0 0.0
  %217 = vmatprep.subr.mxu0 0.0
  %218 = vmatpush1.msra.mxu0 0.0
  %219 = vmatprep.subr.mxu0 0.0
  %220 = vmatpush1.msra.mxu0 0.0
  %221 = vmatprep.subr.mxu0 0.0
  %222 = vmatpush1.msra.mxu0 0.0
  %223 = vmatprep.subr.mxu0 0.0
  %224 = vmatpush1.msra.mxu0 0.0
  %225 = vmatprep.subr.mxu0 0.0
  %226 = vmatpush1.msra.mxu0 0.0
  %227 = vmatprep.subr.mxu0 0.0
  %228 = vmatpush1.msra.mxu0 0.0
  %229 = vmatprep.subr.mxu0 0.0
  %230 = vmatpush1.msra.mxu0 0.0
  %231 = vmatprep.subr.mxu0 0.0
  %232 = vmatpush1.msra.mxu0 0.0
  %233 = vmatprep.subr.mxu0 0.0
  %234 = vmatpush1.msra.mxu0 0.0
  %235 = vmatprep.subr.mxu0 0.0
  %236 = vmatpush1.msra.mxu0 0.0
  %237 = vmatprep.subr.mxu0 0.0
  %238 = vmatpush1.msra.mxu0 0.0
  %239 = vmatprep.subr.mxu0 0.0
  %240 = vmatpush1.msra.mxu0 0.0
  %241 = vmatprep.subr.mxu0 0.0
  %242 = vmatpush1.msra.mxu0 0.0
  %243 = vmatprep.mubr.f32.mxu0 0.0
  %244 = vmatmul.mubr.f32.gmra.mrb[0].mxu0 %v177
  %v245 = vpop.f32.mrb[0].mxu0
  %v246 = vadd.f32 %v174, %v245
  %v247 = vpop.f32.mrb[0].mxu0
  %248 = vdwg.mxu0
  %v249 = vmax.f32 %v246, 0.0
  %v250 = vsel %vm54, %v249, 0.0
  %251 = vadd.xlane.f32.xlu0 %v250
  %v252 = vpop.xlane.xlu0 %251
  %v253 = vmul.f32 %v252, %v132
  %v254 = vmul.f32 %v249, %v249
  %v255 = vsel %vm54, %v254, 0.0
  %256 = vadd.xlane.f32.xlu0 %v255
  %v257 = vpop.xlane.xlu0 %256
  %v258 = vmul.f32 %v257, %v132
  %v259 = vmul.f32 %v253, %v253
  %v260 = vsub.f32 %v258, %v259
  %v261 = vsub.f32 %v249, %v253
  %v262 = vadd.f32 %v260, 1e-05
  %v263 = vrsqrt.pop %v262
  %v264 = vmul.f32 %v261, %v263
  %v265 = vld [vmem:[%s7] sm:$0x1]
  %v267 = vlaneseq
  %v268 = vshrl.u32 %v267, 7
  %v269 = vsub.s32 0, %v268
  %v270 = vrot.slane %v265, %v269
  %v272 = vmul.f32 %v264, %v270
  %v273 = vld [vmem:[%s8] sm:$0x1]
  %v275 = vlaneseq
  %v276 = vshrl.u32 %v275, 7
  %v277 = vsub.s32 0, %v276
  %v278 = vrot.slane %v273, %v277
  %v280 = vadd.f32 %v272, %v278
  %v281 = vld [vmem:[%s9] sm:$0xff]
  %v282 = vld [vmem:[%s9 + $0x8] sm:$0xff]
  %v283 = vld [vmem:[%s9 + $0x10] sm:$0xff]
  %v284 = vld [vmem:[%s9 + $0x18] sm:$0xff]
  %v285 = vld [vmem:[%s9 + $0x20] sm:$0xff]
  %v286 = vld [vmem:[%s9 + $0x28] sm:$0xff]
  %v287 = vld [vmem:[%s9 + $0x30] sm:$0xff]
  %v288 = vld [vmem:[%s9 + $0x38] sm:$0xff]
  %v289 = vld [vmem:[%s10] sm:$0x1]
  %v291 = vlaneseq
  %v292 = vshrl.u32 %v291, 7
  %v293 = vsub.s32 0, %v292
  %v294 = vrot.slane %v289, %v293
  %v297 = vsel %vm54, %v280, 0
  %299 = vmatprep.subr.mxu0 0.0
  %300 = vmatpush1.msra.mxu0 %v281
  %301 = vmatprep.subr.mxu0 0.0
  %302 = vmatpush1.msra.mxu0 %v282
  %303 = vmatprep.subr.mxu0 0.0
  %304 = vmatpush1.msra.mxu0 %v283
  %305 = vmatprep.subr.mxu0 0.0
  %306 = vmatpush1.msra.mxu0 %v284
  %307 = vmatprep.subr.mxu0 0.0
  %308 = vmatpush1.msra.mxu0 %v285
  %309 = vmatprep.subr.mxu0 0.0
  %310 = vmatpush1.msra.mxu0 %v286
  %311 = vmatprep.subr.mxu0 0.0
  %312 = vmatpush1.msra.mxu0 %v287
  %313 = vmatprep.subr.mxu0 0.0
  %314 = vmatpush1.msra.mxu0 %v288
  %315 = vmatprep.subr.mxu0 0.0
  %316 = vmatpush1.msra.mxu0 0.0
  %317 = vmatprep.subr.mxu0 0.0
  %318 = vmatpush1.msra.mxu0 0.0
  %319 = vmatprep.subr.mxu0 0.0
  %320 = vmatpush1.msra.mxu0 0.0
  %321 = vmatprep.subr.mxu0 0.0
  %322 = vmatpush1.msra.mxu0 0.0
  %323 = vmatprep.subr.mxu0 0.0
  %324 = vmatpush1.msra.mxu0 0.0
  %325 = vmatprep.subr.mxu0 0.0
  %326 = vmatpush1.msra.mxu0 0.0
  %327 = vmatprep.subr.mxu0 0.0
  %328 = vmatpush1.msra.mxu0 0.0
  %329 = vmatprep.subr.mxu0 0.0
  %330 = vmatpush1.msra.mxu0 0.0
  %331 = vmatprep.subr.mxu0 0.0
  %332 = vmatpush1.msra.mxu0 0.0
  %333 = vmatprep.subr.mxu0 0.0
  %334 = vmatpush1.msra.mxu0 0.0
  %335 = vmatprep.subr.mxu0 0.0
  %336 = vmatpush1.msra.mxu0 0.0
  %337 = vmatprep.subr.mxu0 0.0
  %338 = vmatpush1.msra.mxu0 0.0
  %339 = vmatprep.subr.mxu0 0.0
  %340 = vmatpush1.msra.mxu0 0.0
  %341 = vmatprep.subr.mxu0 0.0
  %342 = vmatpush1.msra.mxu0 0.0
  %343 = vmatprep.subr.mxu0 0.0
  %344 = vmatpush1.msra.mxu0 0.0
  %345 = vmatprep.subr.mxu0 0.0
  %346 = vmatpush1.msra.mxu0 0.0
  %347 = vmatprep.subr.mxu0 0.0
  %348 = vmatpush1.msra.mxu0 0.0
  %349 = vmatprep.subr.mxu0 0.0
  %350 = vmatpush1.msra.mxu0 0.0
  %351 = vmatprep.subr.mxu0 0.0
  %352 = vmatpush1.msra.mxu0 0.0
  %353 = vmatprep.subr.mxu0 0.0
  %354 = vmatpush1.msra.mxu0 0.0
  %355 = vmatprep.subr.mxu0 0.0
  %356 = vmatpush1.msra.mxu0 0.0
  %357 = vmatprep.subr.mxu0 0.0
  %358 = vmatpush1.msra.mxu0 0.0
  %359 = vmatprep.subr.mxu0 0.0
  %360 = vmatpush1.msra.mxu0 0.0
  %361 = vmatprep.subr.mxu0 0.0
  %362 = vmatpush1.msra.mxu0 0.0
  %363 = vmatprep.mubr.f32.mxu0 0.0
  %364 = vmatmul.mubr.f32.gmra.mrb[0].mxu0 %v297
  %v365 = vpop.f32.mrb[0].mxu0
  %v366 = vadd.f32 %v294, %v365
  %v367 = vpop.f32.mrb[0].mxu0
  %368 = vdwg.mxu0
  %369 = vst [vmem:[%s11] sm:$0xff] %v366
  // Predicated region
  $region46: #{cls_decoder_forward.1} parent=0 // pred_check
    _
  $region47: #{cls_decoder_forward.1} parent=0 // pred_check_branch
    %371 = sbr.rel (0) target = $region49
  $region48: #{cls_decoder_forward.1} parent=0 // pred_region
    _
  $region49: #{cls_decoder_forward.1} parent=0 // pred_fallthru
    _
  // Predicated region
  $region50: #{cls_decoder_forward.1} parent=0 // pred_check
    _
  $region51: #{cls_decoder_forward.1} parent=0 // pred_check_branch
    %373 = sbr.rel (0) target = $region53
  $region52: #{cls_decoder_forward.1} parent=0 // pred_region
    _
  $region53: #{cls_decoder_forward.1} parent=0 // pred_fallthru
    _

</llo_original>
